<compile_context>
chip_gen: v5e
topology: v5e:2x2
jax: 0.10.0
libtpu: 0.0.40
codegen_flags: <defaults>
</compile_context>

<pallas_src>
import jax
import jax.numpy as jnp
from jax import lax
from jax.experimental import pallas as pl
from jax.experimental.pallas import tpu as pltpu


# ----------------------------------------------------------------------------
# Fused kernel: 3 x (conv+ReLU+pool) -> FC -> softmax, all in VMEM
# ----------------------------------------------------------------------------
def _apnea_fused_kernel(x90_ref, w1b_ref, b1_ref, w2p_ref, b2_ref, w3s_ref, b3_ref,
                        wfc_ref, bfc_ref, o_ref, p1s, p2s, h3s):
    # Row spaces (rows = batch * time):
    #   x90/p1s rows : (n, t2)          Nt * 24
    #   p2s rows     : (n, 3*t3 + u)    Nt * 12
    #   h3s rows     : (n, t3)          Nt * 4
    n = o_ref.shape[0]            # Nt
    nR2 = p2s.shape[0]            # Nt * 12
    nR3 = h3s.shape[0]            # Nt * 4
    half = x90_ref.shape[1] // 2  # 45 = 3 taps * 3 kernel * 5 channels

    # ---- stage 1: Conv1d(5->32,k=3,s=3) + ReLU + MaxPool1d(2), fully fused ----
    # Even / odd conv-1 phases are contiguous 45-wide column slabs of the input;
    # the block-diagonal (45,96) weight produces the 3 pooled taps side by side.
    h_even = jnp.dot(x90_ref[:, 0:half], w1b_ref[...],
                     preferred_element_type=jnp.float32)
    h_odd = jnp.dot(x90_ref[:, half:2 * half], w1b_ref[...],
                    preferred_element_type=jnp.float32)
    # relu(max(a+b, c+b)) == max(max(a,c)+b, 0)
    p1s[...] = jnp.maximum(jnp.maximum(h_even, h_odd) + b1_ref[...], 0.0)
    # p1s row (n, t2), cols 32*k2+c  ==  pooled-1 value at time 3*t2+k2, channel c
    # (= exactly the conv-2 receptive field for output time t2, K=96 contiguous).

    # ---- stage 2: Conv1d(32->32,k=3,s=3) + ReLU + MaxPool1d(2) ----
    # Even / odd conv-2 output times are the even / odd rows of p1s (stride-2).
    h2e = jnp.dot(p1s[pl.ds(0, nR2, stride=2)], w2p_ref[...],
                  preferred_element_type=jnp.float32)
    h2o = jnp.dot(p1s[pl.ds(1, nR2, stride=2)], w2p_ref[...],
                  preferred_element_type=jnp.float32)
    p2s[...] = jnp.maximum(jnp.maximum(h2e, h2o) + b2_ref[...], 0.0)
    # p2s row = (n, 3*t3 + u): pooled-2 step u of conv-3's receptive field at t3.

    # ---- stage 3: Conv1d(32->32,k=3,s=3) + ReLU (pool fused into epilogue) ----
    acc = jnp.dot(p2s[pl.ds(0, nR3, stride=3)], w3s_ref[0],
                  preferred_element_type=jnp.float32)
    acc = acc + jnp.dot(p2s[pl.ds(1, nR3, stride=3)], w3s_ref[1],
                        preferred_element_type=jnp.float32)
    acc = acc + jnp.dot(p2s[pl.ds(2, nR3, stride=3)], w3s_ref[2],
                        preferred_element_type=jnp.float32)
    h3s[...] = jnp.maximum(acc + b3_ref[...], 0.0)        # (Nt*4, 32), rows (n, t3)

    # ---- MaxPool1d(2) + Linear(64->2) + 2-class softmax (closed form) ----
    t0 = jnp.maximum(h3s[pl.ds(0, n, stride=4)], h3s[pl.ds(1, n, stride=4)])
    t1 = jnp.maximum(h3s[pl.ds(2, n, stride=4)], h3s[pl.ds(3, n, stride=4)])
    # wfc/bfc already have the softmax "difference" matrix folded in, so
    # z = [l0 - l1, l1 - l0] and softmax == elementwise sigmoid(z) (no reductions).
    z = (jnp.dot(t0, wfc_ref[0], preferred_element_type=jnp.float32)
         + jnp.dot(t1, wfc_ref[1], preferred_element_type=jnp.float32)
         + bfc_ref[...])
    e = jnp.exp(-jnp.abs(z))
    s = 1.0 / (1.0 + e)
    o_ref[...] = jnp.where(z >= 0.0, s, 1.0 - s)


# ----------------------------------------------------------------------------
# One-time parameter preparation (kept out of the per-call forward path)
# ----------------------------------------------------------------------------
def prepare_params(params):
    w1, w2, w3 = params["w1"], params["w2"], params["w3"]      # (32, Cin, 3)
    cin = w1.shape[1]

    # stage-1 im2col weight, row = k*cin + c
    w1m = jnp.transpose(w1, (2, 1, 0)).reshape(3 * cin, 32)
    # block-diagonal: 3 pooled taps produced side by side -> (45, 96)
    w1b = jnp.zeros((3 * 3 * cin, 96), jnp.float32)
    for u in range(3):
        w1b = w1b.at[u * 3 * cin:(u + 1) * 3 * cin, u * 32:(u + 1) * 32].set(w1m)

    # torch's view(-1, 64) flattens (N, 32, 2) channel-major (col = c*2 + t);
    # our pooled layout is time-major (t, c) -> permute the FC weight, then fold
    # in the 2-class softmax difference matrix so the epilogue is a pure sigmoid.
    wfc = jnp.transpose(params["w_fc"].reshape(2, 32, 2), (2, 1, 0))   # [t, c, o]
    diff = jnp.array([[1.0, -1.0], [-1.0, 1.0]], jnp.float32)

    prep = {
        "w1b": w1b,                                                    # (45, 96)
        "b1x3": jnp.tile(params["b1"].reshape(1, 32), (1, 3)),         # (1, 96)
        "w2p": jnp.transpose(w2, (2, 1, 0)).reshape(96, 32),           # row = k*32 + c
        "b2r": params["b2"].reshape(1, 32),
        "w3s": jnp.transpose(w3, (2, 1, 0)),                           # (3, 32, 32) [k, c, o]
        "b3r": params["b3"].reshape(1, 32),
        "wfcd": wfc @ diff,                                            # (2, 32, 2)
        "bfcd": params["b_fc"].reshape(1, 2) @ diff,                   # (1, 2)
    }
    return jax.tree_util.tree_map(lambda a: jnp.asarray(a, jnp.float32), prep)


def _pick_batch_tile(n):
    # Prefer >=2 grid tiles (v7x has 2 TensorCores) while capping per-tile VMEM
    # (~11 MiB at Nt=256, safe on every generation incl. v5e/v7x).
    for cand in (256, 128, 64, 32, 16, 8):
        if cand < n and n % cand == 0:
            return cand
    return n


# ----------------------------------------------------------------------------
# Forward pass: one pallas_call, batch-tiled grid
# ----------------------------------------------------------------------------
def apnea_net_forward(x, prep, *, batch_tile=None, vmem_limit_bytes=None):
    """x: (N, 5, L) float32, PyTorch NCL convention."""
    N, Cin, L = x.shape
    assert Cin == 5, Cin
    # Shape chain required by view(-1, 64): each conv length divisible by 3,
    # each pool length divisible by 2, final pooled length == 2.
    assert L % 3 == 0, L
    T1 = L // 3
    assert T1 % 2 == 0
    P1 = T1 // 2
    assert P1 % 3 == 0
    T2 = P1 // 3
    assert T2 % 2 == 0
    P2 = T2 // 2
    assert P2 % 3 == 0
    T3 = P2 // 3
    assert T3 % 2 == 0 and T3 // 2 == 2, T3   # -> 64 features for the FC (L == 432)

    if batch_tile is None:
        batch_tile = _pick_batch_tile(N)
    Nt = batch_tile
    assert N % Nt == 0 and (Nt == N or Nt % 8 == 0), (N, Nt)
    num_tiles = N // Nt
    rows_b = Nt * T2                      # rows per tile of the grouped im2col

    # Grouped, lane-dense stage-1 im2col (one host-side relayout):
    #   row (n, t2), col = delta*45 + u*15 + k*5 + c  <->  x[n, c, 18*t2 + 6*u + 3*delta + k]
    # i.e. the whole 18-sample receptive window of conv-2 output step t2, with the
    # even/odd conv-1 phases as two contiguous 45-wide column slabs.
    # TODO(synk): fold this channels-last relayout into the kernel (needs lane-strided
    # loads from an (Nt,5,L) block) to drop the extra XLA dispatch at tiny batch.
    xr = x.reshape(N, Cin, T2, 3, 2, 3)                    # [n, c, t2, u, delta, k]
    x90 = jnp.transpose(xr, (0, 2, 4, 3, 5, 1)).reshape(N * T2, 2 * 9 * Cin)

    # Explicit scoped-VMEM budget: double-buffered input + scratch + output,
    # all padded to 128 lanes, plus headroom (v5e default of 16 MiB is too small).
    per_sample = 4 * 128 * (2 * T2 + T2 + T2 // 2 + T3 + 2)
    if vmem_limit_bytes is None:
        vmem_limit_bytes = max(32 << 20, Nt * per_sample + (16 << 20))

    full2 = lambda i: (0, 0)
    full3 = lambda i: (0, 0, 0)

    return pl.pallas_call(
        _apnea_fused_kernel,
        out_shape=jax.ShapeDtypeStruct((N, 2), jnp.float32),
        grid=(num_tiles,),
        in_specs=[
            pl.BlockSpec((rows_b, 2 * 9 * Cin), lambda i: (i, 0)),   # x90 (lane-dense)
            pl.BlockSpec((9 * Cin, 96), full2),                      # w1b (block-diag)
            pl.BlockSpec((1, 96), full2),                            # b1 (tiled x3)
            pl.BlockSpec((96, 32), full2),                           # w2p
            pl.BlockSpec((1, 32), full2),                            # b2
            pl.BlockSpec((3, 32, 32), full3),                        # w3s
            pl.BlockSpec((1, 32), full2),                            # b3
            pl.BlockSpec((2, 32, 2), full3),                         # wfc (diff folded)
            pl.BlockSpec((1, 2), full2),                             # bfc (diff folded)
        ],
        out_specs=pl.BlockSpec((Nt, 2), lambda i: (i, 0)),
        scratch_shapes=[
            pltpu.VMEM((Nt * T2, 96), jnp.float32),       # p1 (pooled stage 1, im2col'd)
            pltpu.VMEM((Nt * T2 // 2, 32), jnp.float32),  # p2 (pooled stage 2)
            pltpu.VMEM((Nt * T3, 32), jnp.float32),       # h3 (pool fused into epilogue)
        ],
        compiler_params=pltpu.CompilerParams(
            dimension_semantics=("parallel",),
            vmem_limit_bytes=int(vmem_limit_bytes)),
    )(x90, prep["w1b"], prep["b1x3"], prep["w2p"], prep["b2r"],
      prep["w3s"], prep["b3r"], prep["wfcd"], prep["bfcd"])


# ----------------------------------------------------------------------------
# Pure-JAX reference (PyTorch semantics) for validation
# ----------------------------------------------------------------------------
def torch_ref_forward(x, params):
    def block(y, w, b):
        y = lax.conv_general_dilated(
            y, w, window_strides=(3,), padding="VALID",
            dimension_numbers=("NCH", "OIH", "NCH"))
        y = jnp.maximum(y + b[None, :, None], 0.0)
        y = lax.reduce_window(
            y, -jnp.inf, lax.max,
            window_dimensions=(1, 1, 2), window_strides=(1, 1, 2), padding="VALID")
        return y

    y = block(x, params["w1"], params["b1"])
    y = block(y, params["w2"], params["b2"])
    y = block(y, params["w3"], params["b3"])
    y = y.reshape(y.shape[0], -1)                       # (N, 64), like torch .view(-1, 64)
    logits = y @ params["w_fc"].T + params["b_fc"]
    return jax.nn.softmax(logits, axis=1)


if __name__ == "__main__":
    key = jax.random.PRNGKey(0)
    ks = jax.random.split(key, 10)
    params = {
        "w1": 0.2 * jax.random.normal(ks[0], (32, 5, 3), jnp.float32),
        "b1": 0.1 * jax.random.normal(ks[1], (32,), jnp.float32),
        "w2": 0.2 * jax.random.normal(ks[2], (32, 32, 3), jnp.float32),
        "b2": 0.1 * jax.random.normal(ks[3], (32,), jnp.float32),
        "w3": 0.2 * jax.random.normal(ks[4], (32, 32, 3), jnp.float32),
        "b3": 0.1 * jax.random.normal(ks[5], (32,), jnp.float32),
        "w_fc": 0.2 * jax.random.normal(ks[6], (2, 64), jnp.float32),
        "b_fc": 0.1 * jax.random.normal(ks[7], (2,), jnp.float32),
    }
    prep = prepare_params(params)
    fwd = jax.jit(lambda xx: apnea_net_forward(xx, prep))

    # L = 432: smallest length for which the three conv(stride=3)+pool(2) stages
    # leave exactly 2 time steps, as required by x.view(-1, 64):
    # 432 -> 144 -> 72 -> 24 -> 12 -> 4 -> 2.
    for n_batch, kx in ((2, ks[8]), (16, ks[9])):     # 16 exercises the 2-tile grid path
        x = jax.random.normal(kx, (n_batch, 5, 432), jnp.float32)
        out = jax.block_until_ready(fwd(x))
        ref = jax.block_until_ready(torch_ref_forward(x, params))
        assert out.shape == (n_batch, 2), out.shape
        assert jnp.allclose(jnp.sum(out, axis=1), 1.0, atol=1e-4)
        assert jnp.allclose(out, ref, atol=1e-3, rtol=1e-3), (out, ref)

    print("KERNEL_OK")
</pallas_src>

<mosaic_0001>
module attributes {stable_mosaic.version = 11 : i64} {
  func.func @_apnea_fused_kernel(%arg0: i32, %arg1: memref<48x90xf32, #tpu.memory_space<vmem>>, %arg2: memref<45x96xf32, #tpu.memory_space<vmem>>, %arg3: memref<1x96xf32, #tpu.memory_space<vmem>>, %arg4: memref<96x32xf32, #tpu.memory_space<vmem>>, %arg5: memref<1x32xf32, #tpu.memory_space<vmem>>, %arg6: memref<3x32x32xf32, #tpu.memory_space<vmem>>, %arg7: memref<1x32xf32, #tpu.memory_space<vmem>>, %arg8: memref<2x32x2xf32, #tpu.memory_space<vmem>>, %arg9: memref<1x2xf32, #tpu.memory_space<vmem>>, %arg10: memref<2x2xf32, #tpu.memory_space<vmem>>, %arg11: memref<48x96xf32, #tpu.memory_space<vmem>>, %arg12: memref<24x32xf32, #tpu.memory_space<vmem>>, %arg13: memref<8x32xf32, #tpu.memory_space<vmem>>) attributes {dimension_semantics = [#tpu.dimension_semantics<parallel>], iteration_bounds = array<i64: 1>, scalar_prefetch = 0 : i64, scratch_operands = 3 : i64, tpu.core_type = #tpu.core_type<tc>, window_params = [{transform_indices = @transform_0, window_bounds = array<i64: 48, 90>}, {pipeline_mode = #tpu.pipeline_mode<synchronous>, transform_indices = @transform_1, window_bounds = array<i64: 45, 96>}, {pipeline_mode = #tpu.pipeline_mode<synchronous>, transform_indices = @transform_2, window_bounds = array<i64: 1, 96>}, {pipeline_mode = #tpu.pipeline_mode<synchronous>, transform_indices = @transform_3, window_bounds = array<i64: 96, 32>}, {pipeline_mode = #tpu.pipeline_mode<synchronous>, transform_indices = @transform_4, window_bounds = array<i64: 1, 32>}, {pipeline_mode = #tpu.pipeline_mode<synchronous>, transform_indices = @transform_5, window_bounds = array<i64: 3, 32, 32>}, {pipeline_mode = #tpu.pipeline_mode<synchronous>, transform_indices = @transform_6, window_bounds = array<i64: 1, 32>}, {pipeline_mode = #tpu.pipeline_mode<synchronous>, transform_indices = @transform_7, window_bounds = array<i64: 2, 32, 2>}, {pipeline_mode = #tpu.pipeline_mode<synchronous>, transform_indices = @transform_8, window_bounds = array<i64: 1, 2>}, {transform_indices = @transform_9, window_bounds = array<i64: 2, 2>}]} {
    %c0 = arith.constant 0 : index
    %c0_0 = arith.constant 0 : index
    %0 = vector.load %arg1[%c0, %c0_0] : memref<48x90xf32, #tpu.memory_space<vmem>>, vector<48x45xf32>
    %c0_1 = arith.constant 0 : index
    %c0_2 = arith.constant 0 : index
    %1 = vector.load %arg2[%c0_1, %c0_2] : memref<45x96xf32, #tpu.memory_space<vmem>>, vector<45x96xf32>
    %cst = arith.constant dense<0.000000e+00> : vector<48x96xf32>
    %2 = tpu.matmul %0, %1, %cst {dimension_numbers = #tpu.dot_dimension_numbers<[1], [0], [0], [1], [0, 0, 1, 1], [], []>} : vector<48x45xf32>, vector<45x96xf32>, vector<48x96xf32> -> vector<48x96xf32>
    %c0_3 = arith.constant 0 : index
    %c45 = arith.constant 45 : index
    %3 = vector.load %arg1[%c0_3, %c45] : memref<48x90xf32, #tpu.memory_space<vmem>>, vector<48x45xf32>
    %c0_4 = arith.constant 0 : index
    %c0_5 = arith.constant 0 : index
    %4 = vector.load %arg2[%c0_4, %c0_5] : memref<45x96xf32, #tpu.memory_space<vmem>>, vector<45x96xf32>
    %cst_6 = arith.constant dense<0.000000e+00> : vector<48x96xf32>
    %5 = tpu.matmul %3, %4, %cst_6 {dimension_numbers = #tpu.dot_dimension_numbers<[1], [0], [0], [1], [0, 0, 1, 1], [], []>} : vector<48x45xf32>, vector<45x96xf32>, vector<48x96xf32> -> vector<48x96xf32>
    %6 = arith.maximumf %2, %5 : vector<48x96xf32>
    %c0_7 = arith.constant 0 : index
    %c0_8 = arith.constant 0 : index
    %7 = vector.load %arg3[%c0_7, %c0_8] : memref<1x96xf32, #tpu.memory_space<vmem>>, vector<1x96xf32>
    %8 = vector.broadcast %7 : vector<1x96xf32> to vector<48x96xf32>
    %9 = arith.addf %6, %8 : vector<48x96xf32>
    %cst_9 = arith.constant 0.000000e+00 : f32
    %10 = vector.broadcast %cst_9 : f32 to vector<48x96xf32>
    %11 = arith.maximumf %9, %10 : vector<48x96xf32>
    %c0_10 = arith.constant 0 : index
    %c0_11 = arith.constant 0 : index
    %12 = vector.load %arg11[%c0_10, %c0_11] : memref<48x96xf32, #tpu.memory_space<vmem>>, vector<48x96xf32>
    tpu.vector_store %arg11[%c0_10, %c0_11], %11 {strides = array<i32>} : memref<48x96xf32, #tpu.memory_space<vmem>>, vector<48x96xf32>,
    %c0_12 = arith.constant 0 : index
    %c0_13 = arith.constant 0 : index
    %13 = tpu.strided_load %arg11[%c0_12, %c0_13] {strides = array<i32: 2, 1>} : memref<48x96xf32, #tpu.memory_space<vmem>>, vector<24x96xf32>
    %c0_14 = arith.constant 0 : index
    %c0_15 = arith.constant 0 : index
    %14 = vector.load %arg4[%c0_14, %c0_15] : memref<96x32xf32, #tpu.memory_space<vmem>>, vector<96x32xf32>
    %cst_16 = arith.constant dense<0.000000e+00> : vector<24x32xf32>
    %15 = tpu.matmul %13, %14, %cst_16 {dimension_numbers = #tpu.dot_dimension_numbers<[1], [0], [0], [1], [0, 0, 1, 1], [], []>} : vector<24x96xf32>, vector<96x32xf32>, vector<24x32xf32> -> vector<24x32xf32>
    %c1 = arith.constant 1 : index
    %c0_17 = arith.constant 0 : index
    %16 = tpu.strided_load %arg11[%c1, %c0_17] {strides = array<i32: 2, 1>} : memref<48x96xf32, #tpu.memory_space<vmem>>, vector<24x96xf32>
    %c0_18 = arith.constant 0 : index
    %c0_19 = arith.constant 0 : index
    %17 = vector.load %arg4[%c0_18, %c0_19] : memref<96x32xf32, #tpu.memory_space<vmem>>, vector<96x32xf32>
    %cst_20 = arith.constant dense<0.000000e+00> : vector<24x32xf32>
    %18 = tpu.matmul %16, %17, %cst_20 {dimension_numbers = #tpu.dot_dimension_numbers<[1], [0], [0], [1], [0, 0, 1, 1], [], []>} : vector<24x96xf32>, vector<96x32xf32>, vector<24x32xf32> -> vector<24x32xf32>
    %19 = arith.maximumf %15, %18 : vector<24x32xf32>
    %c0_21 = arith.constant 0 : index
    %c0_22 = arith.constant 0 : index
    %20 = vector.load %arg5[%c0_21, %c0_22] : memref<1x32xf32, #tpu.memory_space<vmem>>, vector<1x32xf32>
    %21 = vector.broadcast %20 : vector<1x32xf32> to vector<24x32xf32>
    %22 = arith.addf %19, %21 : vector<24x32xf32>
    %cst_23 = arith.constant 0.000000e+00 : f32
    %23 = vector.broadcast %cst_23 : f32 to vector<24x32xf32>
    %24 = arith.maximumf %22, %23 : vector<24x32xf32>
    %c0_24 = arith.constant 0 : index
    %c0_25 = arith.constant 0 : index
    %25 = vector.load %arg12[%c0_24, %c0_25] : memref<24x32xf32, #tpu.memory_space<vmem>>, vector<24x32xf32>
    tpu.vector_store %arg12[%c0_24, %c0_25], %24 {strides = array<i32>} : memref<24x32xf32, #tpu.memory_space<vmem>>, vector<24x32xf32>,
    %c0_26 = arith.constant 0 : index
    %c0_27 = arith.constant 0 : index
    %26 = tpu.strided_load %arg12[%c0_26, %c0_27] {strides = array<i32: 3, 1>} : memref<24x32xf32, #tpu.memory_space<vmem>>, vector<8x32xf32>
    %c0_28 = arith.constant 0 : index
    %c0_29 = arith.constant 0 : index
    %c0_30 = arith.constant 0 : index
    %27 = vector.load %arg6[%c0_28, %c0_29, %c0_30] : memref<3x32x32xf32, #tpu.memory_space<vmem>>, vector<1x32x32xf32>
    %28 = vector.shape_cast %27 : vector<1x32x32xf32> to vector<32x32xf32>
    %cst_31 = arith.constant dense<0.000000e+00> : vector<8x32xf32>
    %29 = tpu.matmul %26, %28, %cst_31 {dimension_numbers = #tpu.dot_dimension_numbers<[1], [0], [0], [1], [0, 0, 1, 1], [], []>} : vector<8x32xf32>, vector<32x32xf32>, vector<8x32xf32> -> vector<8x32xf32>
    %c1_32 = arith.constant 1 : index
    %c0_33 = arith.constant 0 : index
    %30 = tpu.strided_load %arg12[%c1_32, %c0_33] {strides = array<i32: 3, 1>} : memref<24x32xf32, #tpu.memory_space<vmem>>, vector<8x32xf32>
    %c1_34 = arith.constant 1 : index
    %c0_35 = arith.constant 0 : index
    %c0_36 = arith.constant 0 : index
    %31 = vector.load %arg6[%c1_34, %c0_35, %c0_36] : memref<3x32x32xf32, #tpu.memory_space<vmem>>, vector<1x32x32xf32>
    %32 = vector.shape_cast %31 : vector<1x32x32xf32> to vector<32x32xf32>
    %cst_37 = arith.constant dense<0.000000e+00> : vector<8x32xf32>
    %33 = tpu.matmul %30, %32, %cst_37 {dimension_numbers = #tpu.dot_dimension_numbers<[1], [0], [0], [1], [0, 0, 1, 1], [], []>} : vector<8x32xf32>, vector<32x32xf32>, vector<8x32xf32> -> vector<8x32xf32>
    %34 = arith.addf %29, %33 : vector<8x32xf32>
    %c2 = arith.constant 2 : index
    %c0_38 = arith.constant 0 : index
    %35 = tpu.strided_load %arg12[%c2, %c0_38] {strides = array<i32: 3, 1>} : memref<24x32xf32, #tpu.memory_space<vmem>>, vector<8x32xf32>
    %c2_39 = arith.constant 2 : index
    %c0_40 = arith.constant 0 : index
    %c0_41 = arith.constant 0 : index
    %36 = vector.load %arg6[%c2_39, %c0_40, %c0_41] : memref<3x32x32xf32, #tpu.memory_space<vmem>>, vector<1x32x32xf32>
    %37 = vector.shape_cast %36 : vector<1x32x32xf32> to vector<32x32xf32>
    %cst_42 = arith.constant dense<0.000000e+00> : vector<8x32xf32>
    %38 = tpu.matmul %35, %37, %cst_42 {dimension_numbers = #tpu.dot_dimension_numbers<[1], [0], [0], [1], [0, 0, 1, 1], [], []>} : vector<8x32xf32>, vector<32x32xf32>, vector<8x32xf32> -> vector<8x32xf32>
    %39 = arith.addf %34, %38 : vector<8x32xf32>
    %c0_43 = arith.constant 0 : index
    %c0_44 = arith.constant 0 : index
    %40 = vector.load %arg7[%c0_43, %c0_44] : memref<1x32xf32, #tpu.memory_space<vmem>>, vector<1x32xf32>
    %41 = vector.broadcast %40 : vector<1x32xf32> to vector<8x32xf32>
    %42 = arith.addf %39, %41 : vector<8x32xf32>
    %cst_45 = arith.constant 0.000000e+00 : f32
    %43 = vector.broadcast %cst_45 : f32 to vector<8x32xf32>
    %44 = arith.maximumf %42, %43 : vector<8x32xf32>
    %c0_46 = arith.constant 0 : index
    %c0_47 = arith.constant 0 : index
    %45 = vector.load %arg13[%c0_46, %c0_47] : memref<8x32xf32, #tpu.memory_space<vmem>>, vector<8x32xf32>
    tpu.vector_store %arg13[%c0_46, %c0_47], %44 {strides = array<i32>} : memref<8x32xf32, #tpu.memory_space<vmem>>, vector<8x32xf32>,
    %c0_48 = arith.constant 0 : index
    %c0_49 = arith.constant 0 : index
    %46 = tpu.strided_load %arg13[%c0_48, %c0_49] {strides = array<i32: 4, 1>} : memref<8x32xf32, #tpu.memory_space<vmem>>, vector<2x32xf32>
    %c1_50 = arith.constant 1 : index
    %c0_51 = arith.constant 0 : index
    %47 = tpu.strided_load %arg13[%c1_50, %c0_51] {strides = array<i32: 4, 1>} : memref<8x32xf32, #tpu.memory_space<vmem>>, vector<2x32xf32>
    %48 = arith.maximumf %46, %47 : vector<2x32xf32>
    %c2_52 = arith.constant 2 : index
    %c0_53 = arith.constant 0 : index
    %49 = tpu.strided_load %arg13[%c2_52, %c0_53] {strides = array<i32: 4, 1>} : memref<8x32xf32, #tpu.memory_space<vmem>>, vector<2x32xf32>
    %c3 = arith.constant 3 : index
    %c0_54 = arith.constant 0 : index
    %50 = tpu.strided_load %arg13[%c3, %c0_54] {strides = array<i32: 4, 1>} : memref<8x32xf32, #tpu.memory_space<vmem>>, vector<2x32xf32>
    %51 = arith.maximumf %49, %50 : vector<2x32xf32>
    %c0_55 = arith.constant 0 : index
    %c0_56 = arith.constant 0 : index
    %c0_57 = arith.constant 0 : index
    %52 = vector.load %arg8[%c0_55, %c0_56, %c0_57] : memref<2x32x2xf32, #tpu.memory_space<vmem>>, vector<1x32x2xf32>
    %53 = vector.shape_cast %52 : vector<1x32x2xf32> to vector<32x2xf32>
    %cst_58 = arith.constant dense<0.000000e+00> : vector<2x2xf32>
    %54 = tpu.matmul %48, %53, %cst_58 {dimension_numbers = #tpu.dot_dimension_numbers<[1], [0], [0], [1], [0, 0, 1, 1], [], []>} : vector<2x32xf32>, vector<32x2xf32>, vector<2x2xf32> -> vector<2x2xf32>
    %c1_59 = arith.constant 1 : index
    %c0_60 = arith.constant 0 : index
    %c0_61 = arith.constant 0 : index
    %55 = vector.load %arg8[%c1_59, %c0_60, %c0_61] : memref<2x32x2xf32, #tpu.memory_space<vmem>>, vector<1x32x2xf32>
    %56 = vector.shape_cast %55 : vector<1x32x2xf32> to vector<32x2xf32>
    %cst_62 = arith.constant dense<0.000000e+00> : vector<2x2xf32>
    %57 = tpu.matmul %51, %56, %cst_62 {dimension_numbers = #tpu.dot_dimension_numbers<[1], [0], [0], [1], [0, 0, 1, 1], [], []>} : vector<2x32xf32>, vector<32x2xf32>, vector<2x2xf32> -> vector<2x2xf32>
    %58 = arith.addf %54, %57 : vector<2x2xf32>
    %c0_63 = arith.constant 0 : index
    %c0_64 = arith.constant 0 : index
    %59 = vector.load %arg9[%c0_63, %c0_64] : memref<1x2xf32, #tpu.memory_space<vmem>>, vector<1x2xf32>
    %60 = vector.broadcast %59 : vector<1x2xf32> to vector<2x2xf32>
    %61 = arith.addf %58, %60 : vector<2x2xf32>
    %62 = math.absf %61 : vector<2x2xf32>
    %cst_65 = arith.constant 0.000000e+00 : f32
    %63 = vector.broadcast %cst_65 : f32 to vector<2x2xf32>
    %64 = arith.subf %63, %62 : vector<2x2xf32>
    %65 = math.exp %64 : vector<2x2xf32>
    %cst_66 = arith.constant 1.000000e+00 : f32
    %66 = vector.broadcast %cst_66 : f32 to vector<2x2xf32>
    %67 = arith.addf %66, %65 : vector<2x2xf32>
    %cst_67 = arith.constant 1.000000e+00 : f32
    %68 = vector.broadcast %cst_67 : f32 to vector<2x2xf32>
    %69 = arith.divf %68, %67 : vector<2x2xf32>
    %cst_68 = arith.constant 0.000000e+00 : f32
    %70 = vector.broadcast %cst_68 : f32 to vector<2x2xf32>
    %71 = arith.cmpf oge, %61, %70 : vector<2x2xf32>
    %cst_69 = arith.constant 1.000000e+00 : f32
    %72 = vector.broadcast %cst_69 : f32 to vector<2x2xf32>
    %73 = arith.subf %72, %69 : vector<2x2xf32>
    %74 = arith.select %71, %69, %73 : vector<2x2xi1>, vector<2x2xf32>
    %c0_70 = arith.constant 0 : index
    %c0_71 = arith.constant 0 : index
    %75 = vector.load %arg10[%c0_70, %c0_71] : memref<2x2xf32, #tpu.memory_space<vmem>>, vector<2x2xf32>
    tpu.vector_store %arg10[%c0_70, %c0_71], %74 {strides = array<i32>} : memref<2x2xf32, #tpu.memory_space<vmem>>, vector<2x2xf32>,
    return
  }
  func.func @transform_0(%arg0: i32) -> (i32, i32) {
    %c0_i32 = arith.constant 0 : i32
    %c0_i32_0 = arith.constant 0 : i32
    return %arg0, %c0_i32 : i32, i32
  }
  func.func @transform_1(%arg0: i32) -> (i32, i32) {
    %c0_i32 = arith.constant 0 : i32
    %c0_i32_0 = arith.constant 0 : i32
    %c0_i32_1 = arith.constant 0 : i32
    return %c0_i32, %c0_i32_0 : i32, i32
  }
  func.func @transform_2(%arg0: i32) -> (i32, i32) {
    %c0_i32 = arith.constant 0 : i32
    %c0_i32_0 = arith.constant 0 : i32
    %c0_i32_1 = arith.constant 0 : i32
    return %c0_i32, %c0_i32_0 : i32, i32
  }
  func.func @transform_3(%arg0: i32) -> (i32, i32) {
    %c0_i32 = arith.constant 0 : i32
    %c0_i32_0 = arith.constant 0 : i32
    %c0_i32_1 = arith.constant 0 : i32
    return %c0_i32, %c0_i32_0 : i32, i32
  }
  func.func @transform_4(%arg0: i32) -> (i32, i32) {
    %c0_i32 = arith.constant 0 : i32
    %c0_i32_0 = arith.constant 0 : i32
    %c0_i32_1 = arith.constant 0 : i32
    return %c0_i32, %c0_i32_0 : i32, i32
  }
  func.func @transform_5(%arg0: i32) -> (i32, i32, i32) {
    %c0_i32 = arith.constant 0 : i32
    %c0_i32_0 = arith.constant 0 : i32
    %c0_i32_1 = arith.constant 0 : i32
    %c0_i32_2 = arith.constant 0 : i32
    return %c0_i32, %c0_i32_0, %c0_i32_1 : i32, i32, i32
  }
  func.func @transform_6(%arg0: i32) -> (i32, i32) {
    %c0_i32 = arith.constant 0 : i32
    %c0_i32_0 = arith.constant 0 : i32
    %c0_i32_1 = arith.constant 0 : i32
    return %c0_i32, %c0_i32_0 : i32, i32
  }
  func.func @transform_7(%arg0: i32) -> (i32, i32, i32) {
    %c0_i32 = arith.constant 0 : i32
    %c0_i32_0 = arith.constant 0 : i32
    %c0_i32_1 = arith.constant 0 : i32
    %c0_i32_2 = arith.constant 0 : i32
    return %c0_i32, %c0_i32_0, %c0_i32_1 : i32, i32, i32
  }
  func.func @transform_8(%arg0: i32) -> (i32, i32) {
    %c0_i32 = arith.constant 0 : i32
    %c0_i32_0 = arith.constant 0 : i32
    %c0_i32_1 = arith.constant 0 : i32
    return %c0_i32, %c0_i32_0 : i32, i32
  }
  func.func @transform_9(%arg0: i32) -> (i32, i32) {
    %c0_i32 = arith.constant 0 : i32
    %c0_i32_0 = arith.constant 0 : i32
    return %arg0, %c0_i32 : i32, i32
  }
}

</mosaic_0001>

<llo_original>
// kernel: _lambda_.1
$region0: #{_lambda_.1}
  #allocation0 [shape = 'u32[]', space=smem, size = 0x4, offset = 0x4, fixed_abs, tag = 'smem constant byte address 0x4 - core index']
  #allocation1 [shape = 'u32[72,128]{1,0:T(1,128)}', space=vmem, size = 0x9000, scoped, tag = 'internal scratch']
  #allocation2 [shape = 'f32[48,96]{1,0:T(8,128)}', space=vmem, size = 0x6000, scoped, tag = 'scratch operand']
  #allocation3 [shape = 'f32[24,32]{1,0:T(8,128)}', space=vmem, size = 0x3000, scoped, tag = 'scratch operand']
  #allocation4 [shape = 'f32[8,32]{1,0:T(8,128)}', space=vmem, size = 0x1000, scoped, tag = 'scratch operand']
  %s0 = inlined_call_operand.vmem [shape: f32[48,90], index: 0, kind: input, shape index: {}]
  %s1 = inlined_call_operand.vmem [shape: f32[45,96], index: 1, kind: input, shape index: {}]
  %s2 = inlined_call_operand.vmem [shape: f32[1,96], index: 2, kind: input, shape index: {}]
  %s3 = inlined_call_operand.vmem [shape: f32[96,32], index: 3, kind: input, shape index: {}]
  %s4 = inlined_call_operand.vmem [shape: f32[1,32], index: 4, kind: input, shape index: {}]
  %s5 = inlined_call_operand.vmem [shape: f32[3,32,32], index: 5, kind: input, shape index: {}]
  %s6 = inlined_call_operand.vmem [shape: f32[1,32], index: 6, kind: input, shape index: {}]
  %s7 = inlined_call_operand.vmem [shape: f32[2,32,2], index: 7, kind: input, shape index: {}]
  %s8 = inlined_call_operand.vmem [shape: f32[1,2], index: 8, kind: input, shape index: {}]
  %s9 = inlined_call_operand.hbm [shape: f32[2,2], index: 9, kind: output, shape index: {}]
  %s10 = sld [smem:[#allocation0]]
  $region46: #{_lambda_.1} parent=0
    _
  %s12 = ssub.s32 1, %s10
  %s13 = scalar_select 0, %s12, %s10
  $region1: #{_lambda_.1} parent=0
    #allocation5 [shape = 'u8[1024]{0}', space=vmem, size = 0x400, scoped, tag = 'output window, operand 0, single buffered']
    #allocation6 [shape = 's32[1]{0}', space=sflag, size = 0x4, scoped, tag = 'scoped memory for _lambda_.1']
    %14 = vsyncpa [#allocation6], 0
    // Predicated region
    $region2: #{_lambda_.1} parent=1 // pred_check
      _
    $region3: #{_lambda_.1} parent=1 // pred_check_branch
      %16 = sbr.rel (0) target = $region5
    $region4: #{_lambda_.1} parent=1 // pred_region
      _
    $region5: #{_lambda_.1} parent=1 // pred_fallthru
      _
    // Predicated region
    $region6: #{_lambda_.1} parent=1 // pred_check
      _
    $region7: #{_lambda_.1} parent=1 // pred_check_branch
      %18 = sbr.rel (0) target = $region9
    $region8: #{_lambda_.1} parent=1 // pred_region
      _
    $region9: #{_lambda_.1} parent=1 // pred_fallthru
      _
    // Predicated region
    $region10: #{_lambda_.1} parent=1 // pred_check
      _
    $region11: #{_lambda_.1} parent=1 // pred_check_branch
      %20 = sbr.rel (0) target = $region13
    $region12: #{_lambda_.1} parent=1 // pred_region
      _
    $region13: #{_lambda_.1} parent=1 // pred_fallthru
      _
    // Predicated region
    $region14: #{_lambda_.1} parent=1 // pred_check
      _
    $region15: #{_lambda_.1} parent=1 // pred_check_branch
      %22 = sbr.rel (0) target = $region17
    $region16: #{_lambda_.1} parent=1 // pred_region
      _
    $region17: #{_lambda_.1} parent=1 // pred_fallthru
      _
    // Predicated region
    $region18: #{_lambda_.1} parent=1 // pred_check
      _
    $region19: #{_lambda_.1} parent=1 // pred_check_branch
      %24 = sbr.rel (0) target = $region21
    $region20: #{_lambda_.1} parent=1 // pred_region
      _
    $region21: #{_lambda_.1} parent=1 // pred_fallthru
      _
    // Predicated region
    $region22: #{_lambda_.1} parent=1 // pred_check
      _
    $region23: #{_lambda_.1} parent=1 // pred_check_branch
      %26 = sbr.rel (0) target = $region25
    $region24: #{_lambda_.1} parent=1 // pred_region
      _
    $region25: #{_lambda_.1} parent=1 // pred_fallthru
      _
    // Predicated region
    $region26: #{_lambda_.1} parent=1 // pred_check
      _
    $region27: #{_lambda_.1} parent=1 // pred_check_branch
      %28 = sbr.rel (0) target = $region29
    $region28: #{_lambda_.1} parent=1 // pred_region
      _
    $region29: #{_lambda_.1} parent=1 // pred_fallthru
      _
    // Predicated region
    $region30: #{_lambda_.1} parent=1 // pred_check
      _
    $region31: #{_lambda_.1} parent=1 // pred_check_branch
      %30 = sbr.rel (0) target = $region33
    $region32: #{_lambda_.1} parent=1 // pred_region
      _
    $region33: #{_lambda_.1} parent=1 // pred_fallthru
      _
    // Predicated region
    $region34: #{_lambda_.1} parent=1 // pred_check
      _
    $region35: #{_lambda_.1} parent=1 // pred_check_branch
      %32 = sbr.rel (0) target = $region37
    $region36: #{_lambda_.1} parent=1 // pred_region
      _
    $region37: #{_lambda_.1} parent=1 // pred_fallthru
      _
    %v33 = vld [vmem:[%s0] sm:$0xff]
    %v34 = vld [vmem:[%s0 + $0x8] sm:$0xff]
    %v35 = vld [vmem:[%s0 + $0x10] sm:$0xff]
    %v36 = vld [vmem:[%s0 + $0x18] sm:$0xff]
    %v37 = vld [vmem:[%s0 + $0x20] sm:$0xff]
    %v38 = vld [vmem:[%s0 + $0x28] sm:$0xff]
    %v39 = vld [vmem:[%s1] sm:$0xff]
    %v40 = vld [vmem:[%s1 + $0x8] sm:$0xff]
    %v41 = vld [vmem:[%s1 + $0x10] sm:$0xff]
    %v42 = vld [vmem:[%s1 + $0x18] sm:$0xff]
    %v43 = vld [vmem:[%s1 + $0x20] sm:$0xff]
    %v44 = vld [vmem:[%s1 + $0x28] sm:$0x1f]
    %vm45 = vcmask 367616
    %v47 = vsel %vm45, %v33, 0
    %v50 = vsel %vm45, %v34, 0
    %v53 = vsel %vm45, %v35, 0
    %v56 = vsel %vm45, %v36, 0
    %v59 = vsel %vm45, %v37, 0
    %v62 = vsel %vm45, %v38, 0
    %vm64 = vcmask 1044480
    %v66 = vsel %vm64, %v44, 0
    %68 = vmatpush.msra.mxu0 0.0
    %69 = vmatpush.msra.mxu0 0.0
    %70 = vmatpush.msra.mxu0 0.0
    %71 = vmatpush.msra.mxu0 0.0
    %72 = vmatpush.msra.mxu0 0.0
    %73 = vmatpush.msra.mxu0 0.0
    %74 = vmatpush.msra.mxu0 0.0
    %75 = vmatpush.msra.mxu0 0.0
    %76 = vmatpush.msra.mxu0 0.0
    %77 = vmatpush.msra.mxu0 0.0
    %78 = vmatpush.msra.mxu0 %v66
    %79 = vmatpush.msra.mxu0 %v43
    %80 = vmatpush.msra.mxu0 %v42
    %81 = vmatpush.msra.mxu0 %v41
    %82 = vmatpush.msra.mxu0 %v40
    %83 = vmatpush.msra.mxu0 %v39
    %84 = vmatmul.f32.gmra.mxu0 %v47
    %v85 = vpop.f32.mrf.mxu0
    %v86 = vadd.f32 0.0, %v85
    %87 = vmatmul.f32.gmra.mxu0 %v50
    %v88 = vpop.f32.mrf.mxu0
    %v89 = vadd.f32 0.0, %v88
    %90 = vmatmul.f32.gmra.mxu0 %v53
    %v91 = vpop.f32.mrf.mxu0
    %v92 = vadd.f32 0.0, %v91
    %93 = vmatmul.f32.gmra.mxu0 %v56
    %v94 = vpop.f32.mrf.mxu0
    %v95 = vadd.f32 0.0, %v94
    %96 = vmatmul.f32.gmra.mxu0 %v59
    %v97 = vpop.f32.mrf.mxu0
    %v98 = vadd.f32 0.0, %v97
    %99 = vmatmul.f32.gmra.mxu0 %v62
    %v100 = vpop.f32.mrf.mxu0
    %v101 = vadd.f32 0.0, %v100
    %102 = vdwg.mxu0
    %103 = vrot.lane.b32.xlu0 %v33, 83
    %v104 = vpop.permute.xlu0 %103
    %105 = vrot.lane.b32.xlu0 %v34, 83
    %v106 = vpop.permute.xlu0 %105
    %107 = vrot.lane.b32.xlu0 %v35, 83
    %v108 = vpop.permute.xlu0 %107
    %109 = vrot.lane.b32.xlu0 %v36, 83
    %v110 = vpop.permute.xlu0 %109
    %111 = vrot.lane.b32.xlu0 %v37, 83
    %v112 = vpop.permute.xlu0 %111
    %113 = vrot.lane.b32.xlu0 %v38, 83
    %v114 = vpop.permute.xlu0 %113
    %v115 = vsel %vm45, %v104, 0
    %v117 = vsel %vm45, %v106, 0
    %v119 = vsel %vm45, %v108, 0
    %v121 = vsel %vm45, %v110, 0
    %v123 = vsel %vm45, %v112, 0
    %v125 = vsel %vm45, %v114, 0
    %127 = vmatpush.msra.mxu0 0.0
    %128 = vmatpush.msra.mxu0 0.0
    %129 = vmatpush.msra.mxu0 0.0
    %130 = vmatpush.msra.mxu0 0.0
    %131 = vmatpush.msra.mxu0 0.0
    %132 = vmatpush.msra.mxu0 0.0
    %133 = vmatpush.msra.mxu0 0.0
    %134 = vmatpush.msra.mxu0 0.0
    %135 = vmatpush.msra.mxu0 0.0
    %136 = vmatpush.msra.mxu0 0.0
    %137 = vmatpush.msra.mxu0 %v66
    %138 = vmatpush.msra.mxu0 %v43
    %139 = vmatpush.msra.mxu0 %v42
    %140 = vmatpush.msra.mxu0 %v41
    %141 = vmatpush.msra.mxu0 %v40
    %142 = vmatpush.msra.mxu0 %v39
    %143 = vmatmul.f32.gmra.mxu0 %v115
    %v144 = vpop.f32.mrf.mxu0
    %v145 = vadd.f32 0.0, %v144
    %146 = vmatmul.f32.gmra.mxu0 %v117
    %v147 = vpop.f32.mrf.mxu0
    %v148 = vadd.f32 0.0, %v147
    %149 = vmatmul.f32.gmra.mxu0 %v119
    %v150 = vpop.f32.mrf.mxu0
    %v151 = vadd.f32 0.0, %v150
    %152 = vmatmul.f32.gmra.mxu0 %v121
    %v153 = vpop.f32.mrf.mxu0
    %v154 = vadd.f32 0.0, %v153
    %155 = vmatmul.f32.gmra.mxu0 %v123
    %v156 = vpop.f32.mrf.mxu0
    %v157 = vadd.f32 0.0, %v156
    %158 = vmatmul.f32.gmra.mxu0 %v125
    %v159 = vpop.f32.mrf.mxu0
    %v160 = vadd.f32 0.0, %v159
    %161 = vdwg.mxu0
    %v162 = vmax.f32 %v86, %v145
    %v163 = vmax.f32 %v89, %v148
    %v164 = vmax.f32 %v92, %v151
    %v165 = vmax.f32 %v95, %v154
    %v166 = vmax.f32 %v98, %v157
    %v167 = vmax.f32 %v101, %v160
    %v168 = vld [vmem:[%s2] sm:$0x1]
    %v170 = vperm.slane %v168, 0
    %v172 = vadd.f32 %v162, %v170
    %v173 = vadd.f32 %v163, %v170
    %v174 = vadd.f32 %v164, %v170
    %v175 = vadd.f32 %v165, %v170
    %v176 = vadd.f32 %v166, %v170
    %v177 = vadd.f32 %v167, %v170
    %v178 = vmax.f32 %v172, 0.0
    %v179 = vmax.f32 %v173, 0.0
    %v180 = vmax.f32 %v174, 0.0
    %v181 = vmax.f32 %v175, 0.0
    %v182 = vmax.f32 %v176, 0.0
    %v183 = vmax.f32 %v177, 0.0
    %vm184 = vcmask 785408
    %185 = vst.msk [vmem:[#allocation2] sm:$0xff] %vm184, %v178
    %186 = vst.msk [vmem:[#allocation2 + $0x8] sm:$0xff] %vm184, %v179
    %187 = vst.msk [vmem:[#allocation2 + $0x10] sm:$0xff] %vm184, %v180
    %188 = vst.msk [vmem:[#allocation2 + $0x18] sm:$0xff] %vm184, %v181
    %189 = vst.msk [vmem:[#allocation2 + $0x20] sm:$0xff] %vm184, %v182
    %190 = vst.msk [vmem:[#allocation2 + $0x28] sm:$0xff] %vm184, %v183
    %v191 = vld [vmem:[#allocation2] ss:$2 sm:$0xff]
    %s192 = scalar_lea.vmem [#allocation2], 16
    %v193 = vld [vmem:[%s192] ss:$2 sm:$0xff]
    %s194 = scalar_lea.vmem [#allocation2], 32
    %v195 = vld [vmem:[%s194] ss:$2 sm:$0xff]
    %v196 = vld [vmem:[%s3] sm:$0xff]
    %v197 = vld [vmem:[%s3 + $0x8] sm:$0xff]
    %v198 = vld [vmem:[%s3 + $0x10] sm:$0xff]
    %v199 = vld [vmem:[%s3 + $0x18] sm:$0xff]
    %v200 = vld [vmem:[%s3 + $0x20] sm:$0xff]
    %v201 = vld [vmem:[%s3 + $0x28] sm:$0xff]
    %v202 = vld [vmem:[%s3 + $0x30] sm:$0xff]
    %v203 = vld [vmem:[%s3 + $0x38] sm:$0xff]
    %v204 = vld [vmem:[%s3 + $0x40] sm:$0xff]
    %v205 = vld [vmem:[%s3 + $0x48] sm:$0xff]
    %v206 = vld [vmem:[%s3 + $0x50] sm:$0xff]
    %v207 = vld [vmem:[%s3 + $0x58] sm:$0xff]
    %v209 = vsel %vm184, %v191, 0
    %v212 = vsel %vm184, %v193, 0
    %v215 = vsel %vm184, %v195, 0
    %217 = vmatpush.msra.mxu0 0.0
    %218 = vmatpush.msra.mxu0 0.0
    %219 = vmatpush.msra.mxu0 0.0
    %220 = vmatpush.msra.mxu0 0.0
    %221 = vmatpush.msra.mxu0 %v207
    %222 = vmatpush.msra.mxu0 %v206
    %223 = vmatpush.msra.mxu0 %v205
    %224 = vmatpush.msra.mxu0 %v204
    %225 = vmatpush.msra.mxu0 %v203
    %226 = vmatpush.msra.mxu0 %v202
    %227 = vmatpush.msra.mxu0 %v201
    %228 = vmatpush.msra.mxu0 %v200
    %229 = vmatpush.msra.mxu0 %v199
    %230 = vmatpush.msra.mxu0 %v198
    %231 = vmatpush.msra.mxu0 %v197
    %232 = vmatpush.msra.mxu0 %v196
    %233 = vmatmul.f32.gmra.mxu0 %v209
    %v234 = vpop.f32.mrf.mxu0
    %v235 = vadd.f32 0.0, %v234
    %236 = vmatmul.f32.gmra.mxu0 %v212
    %v237 = vpop.f32.mrf.mxu0
    %v238 = vadd.f32 0.0, %v237
    %239 = vmatmul.f32.gmra.mxu0 %v215
    %v240 = vpop.f32.mrf.mxu0
    %v241 = vadd.f32 0.0, %v240
    %242 = vdwg.mxu0
    %s243 = scalar_lea.vmem [#allocation2], 1
    %v244 = vld [vmem:[%s243] ss:$2 sm:$0xff]
    %s245 = scalar_lea.vmem [#allocation2], 17
    %v246 = vld [vmem:[%s245] ss:$2 sm:$0xff]
    %s247 = scalar_lea.vmem [#allocation2], 33
    %v248 = vld [vmem:[%s247] ss:$2 sm:$0xff]
    %v250 = vsel %vm184, %v244, 0
    %v253 = vsel %vm184, %v246, 0
    %v256 = vsel %vm184, %v248, 0
    %258 = vmatpush.msra.mxu0 0.0
    %259 = vmatpush.msra.mxu0 0.0
    %260 = vmatpush.msra.mxu0 0.0
    %261 = vmatpush.msra.mxu0 0.0
    %262 = vmatpush.msra.mxu0 %v207
    %263 = vmatpush.msra.mxu0 %v206
    %264 = vmatpush.msra.mxu0 %v205
    %265 = vmatpush.msra.mxu0 %v204
    %266 = vmatpush.msra.mxu0 %v203
    %267 = vmatpush.msra.mxu0 %v202
    %268 = vmatpush.msra.mxu0 %v201
    %269 = vmatpush.msra.mxu0 %v200
    %270 = vmatpush.msra.mxu0 %v199
    %271 = vmatpush.msra.mxu0 %v198
    %272 = vmatpush.msra.mxu0 %v197
    %273 = vmatpush.msra.mxu0 %v196
    %274 = vmatmul.f32.gmra.mxu0 %v250
    %v275 = vpop.f32.mrf.mxu0
    %v276 = vadd.f32 0.0, %v275
    %277 = vmatmul.f32.gmra.mxu0 %v253
    %v278 = vpop.f32.mrf.mxu0
    %v279 = vadd.f32 0.0, %v278
    %280 = vmatmul.f32.gmra.mxu0 %v256
    %v281 = vpop.f32.mrf.mxu0
    %v282 = vadd.f32 0.0, %v281
    %283 = vdwg.mxu0
    %v284 = vmax.f32 %v235, %v276
    %v285 = vmax.f32 %v238, %v279
    %v286 = vmax.f32 %v241, %v282
    %v287 = vld [vmem:[%s4] sm:$0x1]
    %v289 = vperm.slane %v287, 0
    %v291 = vadd.f32 %v284, %v289
    %v292 = vadd.f32 %v285, %v289
    %v293 = vadd.f32 %v286, %v289
    %v294 = vmax.f32 %v291, 0.0
    %v295 = vmax.f32 %v292, 0.0
    %v296 = vmax.f32 %v293, 0.0
    %vm297 = vcmask 261120
    %298 = vst.msk [vmem:[#allocation3] sm:$0xff] %vm297, %v294
    %299 = vst.msk [vmem:[#allocation3 + $0x8] sm:$0xff] %vm297, %v295
    %300 = vst.msk [vmem:[#allocation3 + $0x10] sm:$0xff] %vm297, %v296
    %v301 = vld [vmem:[#allocation3] ss:$3 sm:$0xff]
    %v302 = vld [vmem:[%s5] sm:$0xff]
    %v303 = vld [vmem:[%s5 + $0x8] sm:$0xff]
    %v304 = vld [vmem:[%s5 + $0x10] sm:$0xff]
    %v305 = vld [vmem:[%s5 + $0x18] sm:$0xff]
    %s306 = scalar_lea.vmem [#allocation3], 1
    %v307 = vld [vmem:[%s306] ss:$3 sm:$0xff]
    %s308 = scalar_lea.vmem %s5, 32
    %v309 = vld [vmem:[%s308] sm:$0xff]
    %v310 = vld [vmem:[%s308 + $0x8] sm:$0xff]
    %v311 = vld [vmem:[%s308 + $0x10] sm:$0xff]
    %v312 = vld [vmem:[%s308 + $0x18] sm:$0xff]
    %v314 = vsel %vm297, %v307, 0
    %316 = vmatpush.msra.mxu0 0.0
    %317 = vmatpush.msra.mxu0 0.0
    %318 = vmatpush.msra.mxu0 0.0
    %319 = vmatpush.msra.mxu0 0.0
    %320 = vmatpush.msra.mxu0 0.0
    %321 = vmatpush.msra.mxu0 0.0
    %322 = vmatpush.msra.mxu0 0.0
    %323 = vmatpush.msra.mxu0 0.0
    %324 = vmatpush.msra.mxu0 0.0
    %325 = vmatpush.msra.mxu0 0.0
    %326 = vmatpush.msra.mxu0 0.0
    %327 = vmatpush.msra.mxu0 0.0
    %328 = vmatpush.msra.mxu0 %v312
    %329 = vmatpush.msra.mxu0 %v311
    %330 = vmatpush.msra.mxu0 %v310
    %331 = vmatpush.msra.mxu0 %v309
    %332 = vmatmul.f32.gmra.mxu0 %v314
    %v333 = vpop.f32.mrf.mxu0
    %v334 = vadd.f32 0.0, %v333
    %335 = vdwg.mxu0
    %v337 = vsel %vm297, %v301, 0
    %339 = vmatpush.msra.mxu0 0.0
    %340 = vmatpush.msra.mxu0 0.0
    %341 = vmatpush.msra.mxu0 0.0
    %342 = vmatpush.msra.mxu0 0.0
    %343 = vmatpush.msra.mxu0 0.0
    %344 = vmatpush.msra.mxu0 0.0
    %345 = vmatpush.msra.mxu0 0.0
    %346 = vmatpush.msra.mxu0 0.0
    %347 = vmatpush.msra.mxu0 0.0
    %348 = vmatpush.msra.mxu0 0.0
    %349 = vmatpush.msra.mxu0 0.0
    %350 = vmatpush.msra.mxu0 0.0
    %351 = vmatpush.msra.mxu0 %v305
    %352 = vmatpush.msra.mxu0 %v304
    %353 = vmatpush.msra.mxu0 %v303
    %354 = vmatpush.msra.mxu0 %v302
    %355 = vmatmul.f32.gmra.mxu0 %v337
    %v356 = vpop.f32.mrf.mxu0
    %v357 = vadd.f32 %v334, %v356
    %358 = vdwg.mxu0
    %s359 = scalar_lea.vmem [#allocation3], 2
    %v360 = vld [vmem:[%s359] ss:$3 sm:$0xff]
    %s361 = scalar_lea.vmem %s5, 64
    %v362 = vld [vmem:[%s361] sm:$0xff]
    %v363 = vld [vmem:[%s361 + $0x8] sm:$0xff]
    %v364 = vld [vmem:[%s361 + $0x10] sm:$0xff]
    %v365 = vld [vmem:[%s361 + $0x18] sm:$0xff]
    %v367 = vsel %vm297, %v360, 0
    %369 = vmatpush.msra.mxu0 0.0
    %370 = vmatpush.msra.mxu0 0.0
    %371 = vmatpush.msra.mxu0 0.0
    %372 = vmatpush.msra.mxu0 0.0
    %373 = vmatpush.msra.mxu0 0.0
    %374 = vmatpush.msra.mxu0 0.0
    %375 = vmatpush.msra.mxu0 0.0
    %376 = vmatpush.msra.mxu0 0.0
    %377 = vmatpush.msra.mxu0 0.0
    %378 = vmatpush.msra.mxu0 0.0
    %379 = vmatpush.msra.mxu0 0.0
    %380 = vmatpush.msra.mxu0 0.0
    %381 = vmatpush.msra.mxu0 %v365
    %382 = vmatpush.msra.mxu0 %v364
    %383 = vmatpush.msra.mxu0 %v363
    %384 = vmatpush.msra.mxu0 %v362
    %385 = vmatmul.f32.gmra.mxu0 %v367
    %v386 = vpop.f32.mrf.mxu0
    %v387 = vadd.f32 0.0, %v386
    %388 = vdwg.mxu0
    %v389 = vadd.f32 %v357, %v387
    %v390 = vld [vmem:[%s6] sm:$0x1]
    %v392 = vperm.slane %v390, 0
    %v394 = vadd.f32 %v389, %v392
    %v395 = vmax.f32 %v394, 0.0
    %396 = vst.msk [vmem:[#allocation4] sm:$0xff] %vm297, %v395
    %v397 = vld [vmem:[#allocation4] ss:$4 sm:$0x3]
    %s398 = scalar_lea.vmem [#allocation4], 1
    %v399 = vld [vmem:[%s398] ss:$4 sm:$0x3]
    %v400 = vmax.f32 %v397, %v399
    %s401 = scalar_lea.vmem [#allocation4], 2
    %v402 = vld [vmem:[%s401] ss:$4 sm:$0x3]
    %s403 = scalar_lea.vmem [#allocation4], 3
    %v404 = vld [vmem:[%s403] ss:$4 sm:$0x3]
    %v405 = vmax.f32 %v402, %v404
    %v406 = vld [vmem:[%s7] sm:$0xff]
    %v407 = vld [vmem:[%s7 + $0x8] sm:$0xff]
    %v408 = vld [vmem:[%s7 + $0x10] sm:$0xff]
    %v409 = vld [vmem:[%s7 + $0x18] sm:$0xff]
    %s410 = scalar_lea.vmem %s7, 32
    %v411 = vld [vmem:[%s410] sm:$0xff]
    %v412 = vld [vmem:[%s410 + $0x8] sm:$0xff]
    %v413 = vld [vmem:[%s410 + $0x10] sm:$0xff]
    %v414 = vld [vmem:[%s410 + $0x18] sm:$0xff]
    %v416 = vsel %vm297, %v405, 0
    %418 = vmatpush.msra.mxu0 0.0
    %419 = vmatpush.msra.mxu0 0.0
    %420 = vmatpush.msra.mxu0 0.0
    %421 = vmatpush.msra.mxu0 0.0
    %422 = vmatpush.msra.mxu0 0.0
    %423 = vmatpush.msra.mxu0 0.0
    %424 = vmatpush.msra.mxu0 0.0
    %425 = vmatpush.msra.mxu0 0.0
    %426 = vmatpush.msra.mxu0 0.0
    %427 = vmatpush.msra.mxu0 0.0
    %428 = vmatpush.msra.mxu0 0.0
    %429 = vmatpush.msra.mxu0 0.0
    %430 = vmatpush.msra.mxu0 %v414
    %431 = vmatpush.msra.mxu0 %v413
    %432 = vmatpush.msra.mxu0 %v412
    %433 = vmatpush.msra.mxu0 %v411
    %434 = vmatmul.f32.gmra.mxu0 %v416
    %v435 = vpop.f32.mrf.mxu0
    %v436 = vadd.f32 0.0, %v435
    %437 = vdwg.mxu0
    %v439 = vsel %vm297, %v400, 0
    %441 = vmatpush.msra.mxu0 0.0
    %442 = vmatpush.msra.mxu0 0.0
    %443 = vmatpush.msra.mxu0 0.0
    %444 = vmatpush.msra.mxu0 0.0
    %445 = vmatpush.msra.mxu0 0.0
    %446 = vmatpush.msra.mxu0 0.0
    %447 = vmatpush.msra.mxu0 0.0
    %448 = vmatpush.msra.mxu0 0.0
    %449 = vmatpush.msra.mxu0 0.0
    %450 = vmatpush.msra.mxu0 0.0
    %451 = vmatpush.msra.mxu0 0.0
    %452 = vmatpush.msra.mxu0 0.0
    %453 = vmatpush.msra.mxu0 %v409
    %454 = vmatpush.msra.mxu0 %v408
    %455 = vmatpush.msra.mxu0 %v407
    %456 = vmatpush.msra.mxu0 %v406
    %457 = vmatmul.f32.gmra.mxu0 %v439
    %v458 = vpop.f32.mrf.mxu0
    %v459 = vadd.f32 %v436, %v458
    %460 = vdwg.mxu0
    %v461 = vld [vmem:[%s8] sm:$0x1]
    %v463 = vperm.slane %v461, 0
    %v465 = vadd.f32 %v459, %v463
    %v466 = vand.u32 2147483647, %v465
    %v467 = vsub.f32 0.0, %v466
    %v468 = vmul.f32 %v467, 1.442695
    %v469 = vpow.pop %v468
    %v470 = vadd.f32 %v469, 1.0
    %v471 = vrcp.pop %v470
    %v472 = vmul.f32 %v470, %v471
    %v473 = vsub.f32 1.0, %v472
    %v474 = vmul.f32 %v471, %v473
    %v475 = vadd.f32 %v471, %v474
    %vm476 = vweird.f32 %v470
    %vm477 = vweird.f32 %v471
    %vm478 = vmor %vm476, %vm477
    %v479 = vsel %vm478, %v471, %v475
    %v480 = vand.u32 2147483647, %v470
    %vm481 = vcmp.eq.f32.partialorder %v480, 8.507059e+37
    %v482 = vand.u32 %v470, 2147483648
    %v483 = vor.u32 1.1754944e-38, %v482
    %v484 = vsel %vm481, %v483, %v479
    %v485 = vmul.f32 1.0, %v484
    %vm486 = vcmp.ge.f32.partialorder %v465, 0.0
    %v487 = vsub.f32 1.0, %v485
    %v488 = vsel %vm486, %v485, %v487
    %vm489 = vcmask 9216
    %490 = vst.msk [vmem:[#allocation5] sm:$0x3] %vm489, %v488
    // Predicated region
    $region38: #{_lambda_.1} parent=1 // pred_check
      _
    $region39: #{_lambda_.1} parent=1 // pred_check_branch
      %492 = sbr.rel (0) target = $region41
    $region40: #{_lambda_.1} parent=1 // pred_region
      %494 = vsyncadd [#allocation6], 0
      %s496 = sshll.u32 [#allocation5], 4
      %s497 = int_to_ptr.vmem [resolvable:$true] %s496
      %s498 = sshll.u32 %s9, 4
      %s499 = int_to_ptr.hbm [resolvable:$true] %s498
      %501 = dma.vmem_to_hbm [thread:$0]  %s497, 32, %s499, [#allocation6]
    $region41: #{_lambda_.1} parent=1 // pred_fallthru
      _
    // Predicated region
    $region42: #{_lambda_.1} parent=1 // pred_check
      _
    $region43: #{_lambda_.1} parent=1 // pred_check_branch
      %503 = sbr.rel (0) target = $region45
    $region44: #{_lambda_.1} parent=1 // pred_region
      %505 = dma.done [#allocation6], 32
    $region45: #{_lambda_.1} parent=1 // pred_fallthru
      _
    %506 = vsyncpa [#allocation6], 1

</llo_original>
